<compile_context>
chip_gen: v5e
topology: v5e:2x2
jax: 0.10.0
libtpu: 0.0.40
codegen_flags: <defaults>
</compile_context>

<pallas_src>
import functools

import jax
import jax.numpy as jnp
from jax.experimental import pallas as pl
from jax.experimental.pallas import tpu as pltpu


def _mlp_kernel(x_ref, w1_ref, b1_ref, w2_ref, b2_ref, o_ref):
    # x_ref : (IN, B_TILE)  VMEM, lane-dense (batch on the 128-lane axis)
    # w1_ref: (IN, H)       SMEM scalars    b1_ref: (H,) SMEM
    # w2_ref: (H, D)        SMEM scalars    b2_ref: (D,) SMEM
    # o_ref : (D, B_TILE)   VMEM, lane-dense
    in_dim, hid = w1_ref.shape
    out_dim = w2_ref.shape[1]

    x = x_ref[...].astype(jnp.float32)  # (IN, B_TILE)

    # Layer 1: h[j,:] = relu(sum_k w1[k,j] * x[k,:] + b1[j]) — pure VPU FMAs,
    # fully unrolled at trace time (tiny static dims), no MXU involvement.
    h_rows = []
    for j in range(hid):
        acc = x[0:1, :] * w1_ref[0, j]
        for k in range(1, in_dim):
            acc = acc + x[k:k + 1, :] * w1_ref[k, j]
        h_rows.append(jnp.maximum(acc + b1_ref[j], 0.0))

    # Layer 2: out[d,:] = sum_j w2[j,d] * h[j,:] + b2[d]
    out_rows = []
    for d in range(out_dim):
        acc = h_rows[0] * w2_ref[0, d]
        for j in range(1, hid):
            acc = acc + h_rows[j] * w2_ref[j, d]
        out_rows.append(acc + b2_ref[d])

    o_ref[...] = jnp.concatenate(out_rows, axis=0).astype(o_ref.dtype)


def _round_up(n, m):
    return ((n + m - 1) // m) * m


@functools.partial(jax.jit, static_argnames=("block_batch", "min_pallas_batch"))
def my_neural_network_forward(x, w1, b1, w2, b2, *,
                              block_batch=32768, min_pallas_batch=0):
    """Fused forward pass.

    x: (batch, ...) with 5 flattened features.  w1:(5,5), b1:(5,), w2:(5,D),
    b2:(D,) with weights stored as (in, out).  `block_batch` is the lane-tile
    size (multiple of 128); `min_pallas_batch` can be set (e.g. 1024) to route
    tiny batches through plain XLA where pallas_call launch overhead dominates.
    """
    batch = x.shape[0]
    x2d = x.reshape(batch, -1)          # nn.Flatten()
    in_dim = x2d.shape[1]
    out_dim = w2.shape[1]
    b1f = b1.reshape(-1)
    b2f = b2.reshape(-1)

    if batch < min_pallas_batch:        # overhead-dominated regime: plain XLA
        return jnp.maximum(x2d @ w1 + b1f, 0.0) @ w2 + b2f

    # Lane-dense layout: batch on the 128-lane axis.
    bb = _round_up(min(block_batch, _round_up(batch, 128)), 128)
    padded = _round_up(batch, bb)
    x_t = x2d.T                          # (in_dim, batch) — layout plumbing
    if padded != batch:
        x_t = jnp.pad(x_t, ((0, 0), (0, padded - batch)))

    smem = pl.BlockSpec(memory_space=pltpu.MemorySpace.SMEM)
    flops = 2 * batch * in_dim * (in_dim + out_dim)
    bytes_accessed = 4 * (batch * (in_dim + out_dim)
                          + in_dim * in_dim + in_dim * out_dim
                          + in_dim + out_dim)

    out_t = pl.pallas_call(
        _mlp_kernel,
        out_shape=jax.ShapeDtypeStruct((out_dim, padded), x2d.dtype),
        grid=(padded // bb,),
        in_specs=[
            pl.BlockSpec((in_dim, bb), lambda i: (0, i)),   # activations, tiled
            smem, smem, smem, smem,                          # tiny weights/biases
        ],
        out_specs=pl.BlockSpec((out_dim, bb), lambda i: (0, i)),
        compiler_params=pltpu.CompilerParams(
            dimension_semantics=("parallel",),               # shard across TCs on v7x
            vmem_limit_bytes=32 * 1024 * 1024,
        ),
        cost_estimate=pl.CostEstimate(
            flops=flops, transcendentals=0, bytes_accessed=bytes_accessed),
    )(x_t, w1, b1f, w2, b2f)

    return out_t.T[:batch]               # back to (batch, D)


def init_params(output_dim, dtype=jnp.float32):
    """Deterministic init matching PyTorch Linear shapes.
    PyTorch stores weight as (out, in); we store the transpose (in, out)."""
    k = jax.random.PRNGKey(42)
    k1, k2, k3, k4 = jax.random.split(k, 4)
    bound = 1.0 / jnp.sqrt(5.0)  # fan_in = 5 for both layers
    w1 = jax.random.uniform(k1, (5, 5), dtype, -bound, bound)           # (in=5, out=5)
    b1 = jax.random.uniform(k2, (5,), dtype, -bound, bound)
    w2 = jax.random.uniform(k3, (5, output_dim), dtype, -bound, bound)  # (in=5, out=D)
    b2 = jax.random.uniform(k4, (output_dim,), dtype, -bound, bound)
    return w1, b1, w2, b2


if __name__ == "__main__":
    output_dim = 4
    w1, b1, w2, b2 = init_params(output_dim)

    def ref_fwd(xin):
        x2 = xin.reshape(xin.shape[0], -1)
        return jnp.maximum(x2 @ w1 + b1, 0.0) @ w2 + b2

    key = jax.random.PRNGKey(0)

    # Small shape consistent with the module (Linear expects 5 flat features).
    x_small = jax.random.normal(key, (8, 5), dtype=jnp.float32)
    out_small = jax.block_until_ready(
        my_neural_network_forward(x_small, w1, b1, w2, b2))
    assert out_small.shape == (8, output_dim)
    assert jnp.allclose(out_small, ref_fwd(x_small), atol=1e-5, rtol=1e-5)

    # Exercise multi-tile grid + batch padding path (3 grid steps at bb=128).
    x_big = jax.random.normal(jax.random.PRNGKey(1), (300, 5), dtype=jnp.float32)
    out_big = jax.block_until_ready(
        my_neural_network_forward(x_big, w1, b1, w2, b2, block_batch=128))
    assert out_big.shape == (300, output_dim)
    assert jnp.allclose(out_big, ref_fwd(x_big), atol=1e-5, rtol=1e-5)

    print("KERNEL_OK")
</pallas_src>

<mosaic_0001>
module attributes {stable_mosaic.version = 11 : i64} {
  func.func @_mlp_kernel(%arg0: i32, %arg1: memref<5x128xf32, #tpu.memory_space<vmem>>, %arg2: memref<5x5xf32, #tpu.memory_space<smem>>, %arg3: memref<5xf32, #tpu.memory_space<smem>>, %arg4: memref<5x4xf32, #tpu.memory_space<smem>>, %arg5: memref<4xf32, #tpu.memory_space<smem>>, %arg6: memref<4x128xf32, #tpu.memory_space<vmem>>) attributes {dimension_semantics = [#tpu.dimension_semantics<parallel>], iteration_bounds = array<i64: 1>, scalar_prefetch = 0 : i64, scratch_operands = 0 : i64, tpu.core_type = #tpu.core_type<tc>, window_params = [{transform_indices = @transform_0, window_bounds = array<i64: 5, 128>}, {transform_indices = @transform_1, window_bounds = array<i64: 5, 5>}, {transform_indices = @transform_2, window_bounds = array<i64: 5>}, {transform_indices = @transform_3, window_bounds = array<i64: 5, 4>}, {transform_indices = @transform_4, window_bounds = array<i64: 4>}, {transform_indices = @transform_5, window_bounds = array<i64: 4, 128>}]} {
    %c0 = arith.constant 0 : index
    %c0_0 = arith.constant 0 : index
    %0 = vector.load %arg1[%c0, %c0_0] : memref<5x128xf32, #tpu.memory_space<vmem>>, vector<5x128xf32>
    %1 = vector.extract_strided_slice %0 {offsets = [0, 0], sizes = [1, 128], strides = [1, 1]} : vector<5x128xf32> to vector<1x128xf32>
    %c0_1 = arith.constant 0 : index
    %c0_2 = arith.constant 0 : index
    %2 = memref.load %arg2[%c0_1, %c0_2] : memref<5x5xf32, #tpu.memory_space<smem>>
    %3 = vector.broadcast %2 : f32 to vector<1x128xf32>
    %4 = arith.mulf %1, %3 : vector<1x128xf32>
    %5 = vector.extract_strided_slice %0 {offsets = [1, 0], sizes = [1, 128], strides = [1, 1]} : vector<5x128xf32> to vector<1x128xf32>
    %c1 = arith.constant 1 : index
    %c0_3 = arith.constant 0 : index
    %6 = memref.load %arg2[%c1, %c0_3] : memref<5x5xf32, #tpu.memory_space<smem>>
    %7 = vector.broadcast %6 : f32 to vector<1x128xf32>
    %8 = arith.mulf %5, %7 : vector<1x128xf32>
    %9 = arith.addf %4, %8 : vector<1x128xf32>
    %10 = vector.extract_strided_slice %0 {offsets = [2, 0], sizes = [1, 128], strides = [1, 1]} : vector<5x128xf32> to vector<1x128xf32>
    %c2 = arith.constant 2 : index
    %c0_4 = arith.constant 0 : index
    %11 = memref.load %arg2[%c2, %c0_4] : memref<5x5xf32, #tpu.memory_space<smem>>
    %12 = vector.broadcast %11 : f32 to vector<1x128xf32>
    %13 = arith.mulf %10, %12 : vector<1x128xf32>
    %14 = arith.addf %9, %13 : vector<1x128xf32>
    %15 = vector.extract_strided_slice %0 {offsets = [3, 0], sizes = [1, 128], strides = [1, 1]} : vector<5x128xf32> to vector<1x128xf32>
    %c3 = arith.constant 3 : index
    %c0_5 = arith.constant 0 : index
    %16 = memref.load %arg2[%c3, %c0_5] : memref<5x5xf32, #tpu.memory_space<smem>>
    %17 = vector.broadcast %16 : f32 to vector<1x128xf32>
    %18 = arith.mulf %15, %17 : vector<1x128xf32>
    %19 = arith.addf %14, %18 : vector<1x128xf32>
    %20 = vector.extract_strided_slice %0 {offsets = [4, 0], sizes = [1, 128], strides = [1, 1]} : vector<5x128xf32> to vector<1x128xf32>
    %c4 = arith.constant 4 : index
    %c0_6 = arith.constant 0 : index
    %21 = memref.load %arg2[%c4, %c0_6] : memref<5x5xf32, #tpu.memory_space<smem>>
    %22 = vector.broadcast %21 : f32 to vector<1x128xf32>
    %23 = arith.mulf %20, %22 : vector<1x128xf32>
    %24 = arith.addf %19, %23 : vector<1x128xf32>
    %c0_7 = arith.constant 0 : index
    %25 = memref.load %arg3[%c0_7] : memref<5xf32, #tpu.memory_space<smem>>
    %26 = vector.broadcast %25 : f32 to vector<1x128xf32>
    %27 = arith.addf %24, %26 : vector<1x128xf32>
    %cst = arith.constant 0.000000e+00 : f32
    %28 = vector.broadcast %cst : f32 to vector<1x128xf32>
    %29 = arith.maximumf %27, %28 : vector<1x128xf32>
    %30 = vector.extract_strided_slice %0 {offsets = [0, 0], sizes = [1, 128], strides = [1, 1]} : vector<5x128xf32> to vector<1x128xf32>
    %c0_8 = arith.constant 0 : index
    %c1_9 = arith.constant 1 : index
    %31 = memref.load %arg2[%c0_8, %c1_9] : memref<5x5xf32, #tpu.memory_space<smem>>
    %32 = vector.broadcast %31 : f32 to vector<1x128xf32>
    %33 = arith.mulf %30, %32 : vector<1x128xf32>
    %34 = vector.extract_strided_slice %0 {offsets = [1, 0], sizes = [1, 128], strides = [1, 1]} : vector<5x128xf32> to vector<1x128xf32>
    %c1_10 = arith.constant 1 : index
    %c1_11 = arith.constant 1 : index
    %35 = memref.load %arg2[%c1_10, %c1_11] : memref<5x5xf32, #tpu.memory_space<smem>>
    %36 = vector.broadcast %35 : f32 to vector<1x128xf32>
    %37 = arith.mulf %34, %36 : vector<1x128xf32>
    %38 = arith.addf %33, %37 : vector<1x128xf32>
    %39 = vector.extract_strided_slice %0 {offsets = [2, 0], sizes = [1, 128], strides = [1, 1]} : vector<5x128xf32> to vector<1x128xf32>
    %c2_12 = arith.constant 2 : index
    %c1_13 = arith.constant 1 : index
    %40 = memref.load %arg2[%c2_12, %c1_13] : memref<5x5xf32, #tpu.memory_space<smem>>
    %41 = vector.broadcast %40 : f32 to vector<1x128xf32>
    %42 = arith.mulf %39, %41 : vector<1x128xf32>
    %43 = arith.addf %38, %42 : vector<1x128xf32>
    %44 = vector.extract_strided_slice %0 {offsets = [3, 0], sizes = [1, 128], strides = [1, 1]} : vector<5x128xf32> to vector<1x128xf32>
    %c3_14 = arith.constant 3 : index
    %c1_15 = arith.constant 1 : index
    %45 = memref.load %arg2[%c3_14, %c1_15] : memref<5x5xf32, #tpu.memory_space<smem>>
    %46 = vector.broadcast %45 : f32 to vector<1x128xf32>
    %47 = arith.mulf %44, %46 : vector<1x128xf32>
    %48 = arith.addf %43, %47 : vector<1x128xf32>
    %49 = vector.extract_strided_slice %0 {offsets = [4, 0], sizes = [1, 128], strides = [1, 1]} : vector<5x128xf32> to vector<1x128xf32>
    %c4_16 = arith.constant 4 : index
    %c1_17 = arith.constant 1 : index
    %50 = memref.load %arg2[%c4_16, %c1_17] : memref<5x5xf32, #tpu.memory_space<smem>>
    %51 = vector.broadcast %50 : f32 to vector<1x128xf32>
    %52 = arith.mulf %49, %51 : vector<1x128xf32>
    %53 = arith.addf %48, %52 : vector<1x128xf32>
    %c1_18 = arith.constant 1 : index
    %54 = memref.load %arg3[%c1_18] : memref<5xf32, #tpu.memory_space<smem>>
    %55 = vector.broadcast %54 : f32 to vector<1x128xf32>
    %56 = arith.addf %53, %55 : vector<1x128xf32>
    %cst_19 = arith.constant 0.000000e+00 : f32
    %57 = vector.broadcast %cst_19 : f32 to vector<1x128xf32>
    %58 = arith.maximumf %56, %57 : vector<1x128xf32>
    %59 = vector.extract_strided_slice %0 {offsets = [0, 0], sizes = [1, 128], strides = [1, 1]} : vector<5x128xf32> to vector<1x128xf32>
    %c0_20 = arith.constant 0 : index
    %c2_21 = arith.constant 2 : index
    %60 = memref.load %arg2[%c0_20, %c2_21] : memref<5x5xf32, #tpu.memory_space<smem>>
    %61 = vector.broadcast %60 : f32 to vector<1x128xf32>
    %62 = arith.mulf %59, %61 : vector<1x128xf32>
    %63 = vector.extract_strided_slice %0 {offsets = [1, 0], sizes = [1, 128], strides = [1, 1]} : vector<5x128xf32> to vector<1x128xf32>
    %c1_22 = arith.constant 1 : index
    %c2_23 = arith.constant 2 : index
    %64 = memref.load %arg2[%c1_22, %c2_23] : memref<5x5xf32, #tpu.memory_space<smem>>
    %65 = vector.broadcast %64 : f32 to vector<1x128xf32>
    %66 = arith.mulf %63, %65 : vector<1x128xf32>
    %67 = arith.addf %62, %66 : vector<1x128xf32>
    %68 = vector.extract_strided_slice %0 {offsets = [2, 0], sizes = [1, 128], strides = [1, 1]} : vector<5x128xf32> to vector<1x128xf32>
    %c2_24 = arith.constant 2 : index
    %c2_25 = arith.constant 2 : index
    %69 = memref.load %arg2[%c2_24, %c2_25] : memref<5x5xf32, #tpu.memory_space<smem>>
    %70 = vector.broadcast %69 : f32 to vector<1x128xf32>
    %71 = arith.mulf %68, %70 : vector<1x128xf32>
    %72 = arith.addf %67, %71 : vector<1x128xf32>
    %73 = vector.extract_strided_slice %0 {offsets = [3, 0], sizes = [1, 128], strides = [1, 1]} : vector<5x128xf32> to vector<1x128xf32>
    %c3_26 = arith.constant 3 : index
    %c2_27 = arith.constant 2 : index
    %74 = memref.load %arg2[%c3_26, %c2_27] : memref<5x5xf32, #tpu.memory_space<smem>>
    %75 = vector.broadcast %74 : f32 to vector<1x128xf32>
    %76 = arith.mulf %73, %75 : vector<1x128xf32>
    %77 = arith.addf %72, %76 : vector<1x128xf32>
    %78 = vector.extract_strided_slice %0 {offsets = [4, 0], sizes = [1, 128], strides = [1, 1]} : vector<5x128xf32> to vector<1x128xf32>
    %c4_28 = arith.constant 4 : index
    %c2_29 = arith.constant 2 : index
    %79 = memref.load %arg2[%c4_28, %c2_29] : memref<5x5xf32, #tpu.memory_space<smem>>
    %80 = vector.broadcast %79 : f32 to vector<1x128xf32>
    %81 = arith.mulf %78, %80 : vector<1x128xf32>
    %82 = arith.addf %77, %81 : vector<1x128xf32>
    %c2_30 = arith.constant 2 : index
    %83 = memref.load %arg3[%c2_30] : memref<5xf32, #tpu.memory_space<smem>>
    %84 = vector.broadcast %83 : f32 to vector<1x128xf32>
    %85 = arith.addf %82, %84 : vector<1x128xf32>
    %cst_31 = arith.constant 0.000000e+00 : f32
    %86 = vector.broadcast %cst_31 : f32 to vector<1x128xf32>
    %87 = arith.maximumf %85, %86 : vector<1x128xf32>
    %88 = vector.extract_strided_slice %0 {offsets = [0, 0], sizes = [1, 128], strides = [1, 1]} : vector<5x128xf32> to vector<1x128xf32>
    %c0_32 = arith.constant 0 : index
    %c3_33 = arith.constant 3 : index
    %89 = memref.load %arg2[%c0_32, %c3_33] : memref<5x5xf32, #tpu.memory_space<smem>>
    %90 = vector.broadcast %89 : f32 to vector<1x128xf32>
    %91 = arith.mulf %88, %90 : vector<1x128xf32>
    %92 = vector.extract_strided_slice %0 {offsets = [1, 0], sizes = [1, 128], strides = [1, 1]} : vector<5x128xf32> to vector<1x128xf32>
    %c1_34 = arith.constant 1 : index
    %c3_35 = arith.constant 3 : index
    %93 = memref.load %arg2[%c1_34, %c3_35] : memref<5x5xf32, #tpu.memory_space<smem>>
    %94 = vector.broadcast %93 : f32 to vector<1x128xf32>
    %95 = arith.mulf %92, %94 : vector<1x128xf32>
    %96 = arith.addf %91, %95 : vector<1x128xf32>
    %97 = vector.extract_strided_slice %0 {offsets = [2, 0], sizes = [1, 128], strides = [1, 1]} : vector<5x128xf32> to vector<1x128xf32>
    %c2_36 = arith.constant 2 : index
    %c3_37 = arith.constant 3 : index
    %98 = memref.load %arg2[%c2_36, %c3_37] : memref<5x5xf32, #tpu.memory_space<smem>>
    %99 = vector.broadcast %98 : f32 to vector<1x128xf32>
    %100 = arith.mulf %97, %99 : vector<1x128xf32>
    %101 = arith.addf %96, %100 : vector<1x128xf32>
    %102 = vector.extract_strided_slice %0 {offsets = [3, 0], sizes = [1, 128], strides = [1, 1]} : vector<5x128xf32> to vector<1x128xf32>
    %c3_38 = arith.constant 3 : index
    %c3_39 = arith.constant 3 : index
    %103 = memref.load %arg2[%c3_38, %c3_39] : memref<5x5xf32, #tpu.memory_space<smem>>
    %104 = vector.broadcast %103 : f32 to vector<1x128xf32>
    %105 = arith.mulf %102, %104 : vector<1x128xf32>
    %106 = arith.addf %101, %105 : vector<1x128xf32>
    %107 = vector.extract_strided_slice %0 {offsets = [4, 0], sizes = [1, 128], strides = [1, 1]} : vector<5x128xf32> to vector<1x128xf32>
    %c4_40 = arith.constant 4 : index
    %c3_41 = arith.constant 3 : index
    %108 = memref.load %arg2[%c4_40, %c3_41] : memref<5x5xf32, #tpu.memory_space<smem>>
    %109 = vector.broadcast %108 : f32 to vector<1x128xf32>
    %110 = arith.mulf %107, %109 : vector<1x128xf32>
    %111 = arith.addf %106, %110 : vector<1x128xf32>
    %c3_42 = arith.constant 3 : index
    %112 = memref.load %arg3[%c3_42] : memref<5xf32, #tpu.memory_space<smem>>
    %113 = vector.broadcast %112 : f32 to vector<1x128xf32>
    %114 = arith.addf %111, %113 : vector<1x128xf32>
    %cst_43 = arith.constant 0.000000e+00 : f32
    %115 = vector.broadcast %cst_43 : f32 to vector<1x128xf32>
    %116 = arith.maximumf %114, %115 : vector<1x128xf32>
    %117 = vector.extract_strided_slice %0 {offsets = [0, 0], sizes = [1, 128], strides = [1, 1]} : vector<5x128xf32> to vector<1x128xf32>
    %c0_44 = arith.constant 0 : index
    %c4_45 = arith.constant 4 : index
    %118 = memref.load %arg2[%c0_44, %c4_45] : memref<5x5xf32, #tpu.memory_space<smem>>
    %119 = vector.broadcast %118 : f32 to vector<1x128xf32>
    %120 = arith.mulf %117, %119 : vector<1x128xf32>
    %121 = vector.extract_strided_slice %0 {offsets = [1, 0], sizes = [1, 128], strides = [1, 1]} : vector<5x128xf32> to vector<1x128xf32>
    %c1_46 = arith.constant 1 : index
    %c4_47 = arith.constant 4 : index
    %122 = memref.load %arg2[%c1_46, %c4_47] : memref<5x5xf32, #tpu.memory_space<smem>>
    %123 = vector.broadcast %122 : f32 to vector<1x128xf32>
    %124 = arith.mulf %121, %123 : vector<1x128xf32>
    %125 = arith.addf %120, %124 : vector<1x128xf32>
    %126 = vector.extract_strided_slice %0 {offsets = [2, 0], sizes = [1, 128], strides = [1, 1]} : vector<5x128xf32> to vector<1x128xf32>
    %c2_48 = arith.constant 2 : index
    %c4_49 = arith.constant 4 : index
    %127 = memref.load %arg2[%c2_48, %c4_49] : memref<5x5xf32, #tpu.memory_space<smem>>
    %128 = vector.broadcast %127 : f32 to vector<1x128xf32>
    %129 = arith.mulf %126, %128 : vector<1x128xf32>
    %130 = arith.addf %125, %129 : vector<1x128xf32>
    %131 = vector.extract_strided_slice %0 {offsets = [3, 0], sizes = [1, 128], strides = [1, 1]} : vector<5x128xf32> to vector<1x128xf32>
    %c3_50 = arith.constant 3 : index
    %c4_51 = arith.constant 4 : index
    %132 = memref.load %arg2[%c3_50, %c4_51] : memref<5x5xf32, #tpu.memory_space<smem>>
    %133 = vector.broadcast %132 : f32 to vector<1x128xf32>
    %134 = arith.mulf %131, %133 : vector<1x128xf32>
    %135 = arith.addf %130, %134 : vector<1x128xf32>
    %136 = vector.extract_strided_slice %0 {offsets = [4, 0], sizes = [1, 128], strides = [1, 1]} : vector<5x128xf32> to vector<1x128xf32>
    %c4_52 = arith.constant 4 : index
    %c4_53 = arith.constant 4 : index
    %137 = memref.load %arg2[%c4_52, %c4_53] : memref<5x5xf32, #tpu.memory_space<smem>>
    %138 = vector.broadcast %137 : f32 to vector<1x128xf32>
    %139 = arith.mulf %136, %138 : vector<1x128xf32>
    %140 = arith.addf %135, %139 : vector<1x128xf32>
    %c4_54 = arith.constant 4 : index
    %141 = memref.load %arg3[%c4_54] : memref<5xf32, #tpu.memory_space<smem>>
    %142 = vector.broadcast %141 : f32 to vector<1x128xf32>
    %143 = arith.addf %140, %142 : vector<1x128xf32>
    %cst_55 = arith.constant 0.000000e+00 : f32
    %144 = vector.broadcast %cst_55 : f32 to vector<1x128xf32>
    %145 = arith.maximumf %143, %144 : vector<1x128xf32>
    %c0_56 = arith.constant 0 : index
    %c0_57 = arith.constant 0 : index
    %146 = memref.load %arg4[%c0_56, %c0_57] : memref<5x4xf32, #tpu.memory_space<smem>>
    %147 = vector.broadcast %146 : f32 to vector<1x128xf32>
    %148 = arith.mulf %29, %147 : vector<1x128xf32>
    %c1_58 = arith.constant 1 : index
    %c0_59 = arith.constant 0 : index
    %149 = memref.load %arg4[%c1_58, %c0_59] : memref<5x4xf32, #tpu.memory_space<smem>>
    %150 = vector.broadcast %149 : f32 to vector<1x128xf32>
    %151 = arith.mulf %58, %150 : vector<1x128xf32>
    %152 = arith.addf %148, %151 : vector<1x128xf32>
    %c2_60 = arith.constant 2 : index
    %c0_61 = arith.constant 0 : index
    %153 = memref.load %arg4[%c2_60, %c0_61] : memref<5x4xf32, #tpu.memory_space<smem>>
    %154 = vector.broadcast %153 : f32 to vector<1x128xf32>
    %155 = arith.mulf %87, %154 : vector<1x128xf32>
    %156 = arith.addf %152, %155 : vector<1x128xf32>
    %c3_62 = arith.constant 3 : index
    %c0_63 = arith.constant 0 : index
    %157 = memref.load %arg4[%c3_62, %c0_63] : memref<5x4xf32, #tpu.memory_space<smem>>
    %158 = vector.broadcast %157 : f32 to vector<1x128xf32>
    %159 = arith.mulf %116, %158 : vector<1x128xf32>
    %160 = arith.addf %156, %159 : vector<1x128xf32>
    %c4_64 = arith.constant 4 : index
    %c0_65 = arith.constant 0 : index
    %161 = memref.load %arg4[%c4_64, %c0_65] : memref<5x4xf32, #tpu.memory_space<smem>>
    %162 = vector.broadcast %161 : f32 to vector<1x128xf32>
    %163 = arith.mulf %145, %162 : vector<1x128xf32>
    %164 = arith.addf %160, %163 : vector<1x128xf32>
    %c0_66 = arith.constant 0 : index
    %165 = memref.load %arg5[%c0_66] : memref<4xf32, #tpu.memory_space<smem>>
    %166 = vector.broadcast %165 : f32 to vector<1x128xf32>
    %167 = arith.addf %164, %166 : vector<1x128xf32>
    %c0_67 = arith.constant 0 : index
    %c1_68 = arith.constant 1 : index
    %168 = memref.load %arg4[%c0_67, %c1_68] : memref<5x4xf32, #tpu.memory_space<smem>>
    %169 = vector.broadcast %168 : f32 to vector<1x128xf32>
    %170 = arith.mulf %29, %169 : vector<1x128xf32>
    %c1_69 = arith.constant 1 : index
    %c1_70 = arith.constant 1 : index
    %171 = memref.load %arg4[%c1_69, %c1_70] : memref<5x4xf32, #tpu.memory_space<smem>>
    %172 = vector.broadcast %171 : f32 to vector<1x128xf32>
    %173 = arith.mulf %58, %172 : vector<1x128xf32>
    %174 = arith.addf %170, %173 : vector<1x128xf32>
    %c2_71 = arith.constant 2 : index
    %c1_72 = arith.constant 1 : index
    %175 = memref.load %arg4[%c2_71, %c1_72] : memref<5x4xf32, #tpu.memory_space<smem>>
    %176 = vector.broadcast %175 : f32 to vector<1x128xf32>
    %177 = arith.mulf %87, %176 : vector<1x128xf32>
    %178 = arith.addf %174, %177 : vector<1x128xf32>
    %c3_73 = arith.constant 3 : index
    %c1_74 = arith.constant 1 : index
    %179 = memref.load %arg4[%c3_73, %c1_74] : memref<5x4xf32, #tpu.memory_space<smem>>
    %180 = vector.broadcast %179 : f32 to vector<1x128xf32>
    %181 = arith.mulf %116, %180 : vector<1x128xf32>
    %182 = arith.addf %178, %181 : vector<1x128xf32>
    %c4_75 = arith.constant 4 : index
    %c1_76 = arith.constant 1 : index
    %183 = memref.load %arg4[%c4_75, %c1_76] : memref<5x4xf32, #tpu.memory_space<smem>>
    %184 = vector.broadcast %183 : f32 to vector<1x128xf32>
    %185 = arith.mulf %145, %184 : vector<1x128xf32>
    %186 = arith.addf %182, %185 : vector<1x128xf32>
    %c1_77 = arith.constant 1 : index
    %187 = memref.load %arg5[%c1_77] : memref<4xf32, #tpu.memory_space<smem>>
    %188 = vector.broadcast %187 : f32 to vector<1x128xf32>
    %189 = arith.addf %186, %188 : vector<1x128xf32>
    %c0_78 = arith.constant 0 : index
    %c2_79 = arith.constant 2 : index
    %190 = memref.load %arg4[%c0_78, %c2_79] : memref<5x4xf32, #tpu.memory_space<smem>>
    %191 = vector.broadcast %190 : f32 to vector<1x128xf32>
    %192 = arith.mulf %29, %191 : vector<1x128xf32>
    %c1_80 = arith.constant 1 : index
    %c2_81 = arith.constant 2 : index
    %193 = memref.load %arg4[%c1_80, %c2_81] : memref<5x4xf32, #tpu.memory_space<smem>>
    %194 = vector.broadcast %193 : f32 to vector<1x128xf32>
    %195 = arith.mulf %58, %194 : vector<1x128xf32>
    %196 = arith.addf %192, %195 : vector<1x128xf32>
    %c2_82 = arith.constant 2 : index
    %c2_83 = arith.constant 2 : index
    %197 = memref.load %arg4[%c2_82, %c2_83] : memref<5x4xf32, #tpu.memory_space<smem>>
    %198 = vector.broadcast %197 : f32 to vector<1x128xf32>
    %199 = arith.mulf %87, %198 : vector<1x128xf32>
    %200 = arith.addf %196, %199 : vector<1x128xf32>
    %c3_84 = arith.constant 3 : index
    %c2_85 = arith.constant 2 : index
    %201 = memref.load %arg4[%c3_84, %c2_85] : memref<5x4xf32, #tpu.memory_space<smem>>
    %202 = vector.broadcast %201 : f32 to vector<1x128xf32>
    %203 = arith.mulf %116, %202 : vector<1x128xf32>
    %204 = arith.addf %200, %203 : vector<1x128xf32>
    %c4_86 = arith.constant 4 : index
    %c2_87 = arith.constant 2 : index
    %205 = memref.load %arg4[%c4_86, %c2_87] : memref<5x4xf32, #tpu.memory_space<smem>>
    %206 = vector.broadcast %205 : f32 to vector<1x128xf32>
    %207 = arith.mulf %145, %206 : vector<1x128xf32>
    %208 = arith.addf %204, %207 : vector<1x128xf32>
    %c2_88 = arith.constant 2 : index
    %209 = memref.load %arg5[%c2_88] : memref<4xf32, #tpu.memory_space<smem>>
    %210 = vector.broadcast %209 : f32 to vector<1x128xf32>
    %211 = arith.addf %208, %210 : vector<1x128xf32>
    %c0_89 = arith.constant 0 : index
    %c3_90 = arith.constant 3 : index
    %212 = memref.load %arg4[%c0_89, %c3_90] : memref<5x4xf32, #tpu.memory_space<smem>>
    %213 = vector.broadcast %212 : f32 to vector<1x128xf32>
    %214 = arith.mulf %29, %213 : vector<1x128xf32>
    %c1_91 = arith.constant 1 : index
    %c3_92 = arith.constant 3 : index
    %215 = memref.load %arg4[%c1_91, %c3_92] : memref<5x4xf32, #tpu.memory_space<smem>>
    %216 = vector.broadcast %215 : f32 to vector<1x128xf32>
    %217 = arith.mulf %58, %216 : vector<1x128xf32>
    %218 = arith.addf %214, %217 : vector<1x128xf32>
    %c2_93 = arith.constant 2 : index
    %c3_94 = arith.constant 3 : index
    %219 = memref.load %arg4[%c2_93, %c3_94] : memref<5x4xf32, #tpu.memory_space<smem>>
    %220 = vector.broadcast %219 : f32 to vector<1x128xf32>
    %221 = arith.mulf %87, %220 : vector<1x128xf32>
    %222 = arith.addf %218, %221 : vector<1x128xf32>
    %c3_95 = arith.constant 3 : index
    %c3_96 = arith.constant 3 : index
    %223 = memref.load %arg4[%c3_95, %c3_96] : memref<5x4xf32, #tpu.memory_space<smem>>
    %224 = vector.broadcast %223 : f32 to vector<1x128xf32>
    %225 = arith.mulf %116, %224 : vector<1x128xf32>
    %226 = arith.addf %222, %225 : vector<1x128xf32>
    %c4_97 = arith.constant 4 : index
    %c3_98 = arith.constant 3 : index
    %227 = memref.load %arg4[%c4_97, %c3_98] : memref<5x4xf32, #tpu.memory_space<smem>>
    %228 = vector.broadcast %227 : f32 to vector<1x128xf32>
    %229 = arith.mulf %145, %228 : vector<1x128xf32>
    %230 = arith.addf %226, %229 : vector<1x128xf32>
    %c3_99 = arith.constant 3 : index
    %231 = memref.load %arg5[%c3_99] : memref<4xf32, #tpu.memory_space<smem>>
    %232 = vector.broadcast %231 : f32 to vector<1x128xf32>
    %233 = arith.addf %230, %232 : vector<1x128xf32>
    %234 = tpu.concatenate %167, %189, %211, %233 in 0 : vector<1x128xf32>, vector<1x128xf32>, vector<1x128xf32>, vector<1x128xf32> -> vector<4x128xf32>
    %c0_100 = arith.constant 0 : index
    %c0_101 = arith.constant 0 : index
    %235 = vector.load %arg6[%c0_100, %c0_101] : memref<4x128xf32, #tpu.memory_space<vmem>>, vector<4x128xf32>
    tpu.vector_store %arg6[%c0_100, %c0_101], %234 {strides = array<i32>} : memref<4x128xf32, #tpu.memory_space<vmem>>, vector<4x128xf32>,
    return
  }
  func.func @transform_0(%arg0: i32) -> (i32, i32) {
    %c0_i32 = arith.constant 0 : i32
    %c0_i32_0 = arith.constant 0 : i32
    return %c0_i32, %arg0 : i32, i32
  }
  func.func @transform_1(%arg0: i32) -> (i32, i32) {
    %c0_i32 = arith.constant 0 : i32
    %c0_i32_0 = arith.constant 0 : i32
    %c0_i32_1 = arith.constant 0 : i32
    return %c0_i32, %c0_i32_0 : i32, i32
  }
  func.func @transform_2(%arg0: i32) -> i32 {
    %c0_i32 = arith.constant 0 : i32
    %c0_i32_0 = arith.constant 0 : i32
    return %c0_i32 : i32
  }
  func.func @transform_3(%arg0: i32) -> (i32, i32) {
    %c0_i32 = arith.constant 0 : i32
    %c0_i32_0 = arith.constant 0 : i32
    %c0_i32_1 = arith.constant 0 : i32
    return %c0_i32, %c0_i32_0 : i32, i32
  }
  func.func @transform_4(%arg0: i32) -> i32 {
    %c0_i32 = arith.constant 0 : i32
    %c0_i32_0 = arith.constant 0 : i32
    return %c0_i32 : i32
  }
  func.func @transform_5(%arg0: i32) -> (i32, i32) {
    %c0_i32 = arith.constant 0 : i32
    %c0_i32_0 = arith.constant 0 : i32
    return %c0_i32, %arg0 : i32, i32
  }
}

</mosaic_0001>

<llo_original>
// kernel: my_neural_network_forward.1
$region0: #{my_neural_network_forward.1}
  #allocation0 [shape = 'u32[]', space=smem, size = 0x4, offset = 0x4, fixed_abs, tag = 'smem constant byte address 0x4 - core index']
  #allocation1 [shape = 'u32[72,128]{1,0:T(1,128)}', space=vmem, size = 0x9000, scoped, tag = 'internal scratch']
  %s0 = inlined_call_operand.vmem [shape: f32[5,128], index: 0, kind: input, shape index: {}]
  %s1 = inlined_call_operand.vmem [shape: f32[5,5], index: 1, kind: input, shape index: {}]
  %s2 = inlined_call_operand.vmem [shape: f32[5], index: 2, kind: input, shape index: {}]
  %s3 = inlined_call_operand.vmem [shape: f32[5,4], index: 3, kind: input, shape index: {}]
  %s4 = inlined_call_operand.vmem [shape: f32[4], index: 4, kind: input, shape index: {}]
  %s5 = inlined_call_operand.hbm [shape: f32[4,128], index: 5, kind: output, shape index: {}]
  %s6 = sld [smem:[#allocation0]]
  $region46: #{my_neural_network_forward.1} parent=0
    _
  %s8 = ssub.s32 1, %s6
  %s9 = scalar_select 0, %s8, %s6
  $region1: #{my_neural_network_forward.1} parent=0
    #allocation2 [shape = 'u8[4096]{0}', space=smem, size = 0x1000, scoped, tag = 'input window, operand 1, single buffered']
    #allocation3 [shape = 's32[1]{0}', space=sflag, size = 0x4, scoped, tag = 'scoped memory for my_neural_network_forward.1']
    #allocation4 [shape = 's32[1]{0}', space=sflag, size = 0x4, scoped, tag = 'scoped memory for my_neural_network_forward.1']
    #allocation5 [shape = 'u8[512]{0}', space=smem, size = 0x200, scoped, tag = 'input window, operand 2, single buffered']
    #allocation6 [shape = 's32[1]{0}', space=sflag, size = 0x4, scoped, tag = 'scoped memory for my_neural_network_forward.1']
    #allocation7 [shape = 'u8[4096]{0}', space=smem, size = 0x1000, scoped, tag = 'input window, operand 3, single buffered']
    #allocation8 [shape = 'u8[512]{0}', space=smem, size = 0x200, scoped, tag = 'input window, operand 4, single buffered']
    #allocation9 [shape = 's32[1]{0}', space=sflag, size = 0x4, scoped, tag = 'scoped memory for my_neural_network_forward.1']
    #allocation10 [shape = 'u8[2048]{0}', space=vmem, size = 0x800, scoped, tag = 'output window, operand 0, single buffered']
    %10 = vsyncpa [#allocation4], 0
    %11 = vsyncpa [#allocation6], 0
    %12 = vsyncpa [#allocation9], 0
    %13 = vsyncpa [#allocation3], 0
    // Predicated region
    $region2: #{my_neural_network_forward.1} parent=1 // pred_check
      _
    $region3: #{my_neural_network_forward.1} parent=1 // pred_check_branch
      %15 = sbr.rel (0) target = $region5
    $region4: #{my_neural_network_forward.1} parent=1 // pred_region
      _
    $region5: #{my_neural_network_forward.1} parent=1 // pred_fallthru
      _
    // Predicated region
    $region6: #{my_neural_network_forward.1} parent=1 // pred_check
      _
    $region7: #{my_neural_network_forward.1} parent=1 // pred_check_branch
      %17 = sbr.rel (0) target = $region9
    $region8: #{my_neural_network_forward.1} parent=1 // pred_region
      %19 = vsyncadd [#allocation4], 0
      %s21 = sshll.u32 %s1, 4
      %s22 = int_to_ptr.vmem [resolvable:$true] %s21
      %24 = dma.vmem_to_smem %s22, 128, [#allocation2], [#allocation4]
    $region9: #{my_neural_network_forward.1} parent=1 // pred_fallthru
      _
    // Predicated region
    $region10: #{my_neural_network_forward.1} parent=1 // pred_check
      _
    $region11: #{my_neural_network_forward.1} parent=1 // pred_check_branch
      %26 = sbr.rel (0) target = $region13
    $region12: #{my_neural_network_forward.1} parent=1 // pred_region
      %28 = vsyncadd [#allocation6], 0
      %s30 = sshll.u32 %s2, 4
      %s31 = int_to_ptr.vmem [resolvable:$true] %s30
      %33 = dma.vmem_to_smem %s31, 16, [#allocation5], [#allocation6]
    $region13: #{my_neural_network_forward.1} parent=1 // pred_fallthru
      _
    // Predicated region
    $region14: #{my_neural_network_forward.1} parent=1 // pred_check
      _
    $region15: #{my_neural_network_forward.1} parent=1 // pred_check_branch
      %35 = sbr.rel (0) target = $region17
    $region16: #{my_neural_network_forward.1} parent=1 // pred_region
      %37 = vsyncadd [#allocation6], 0
      %s39 = sshll.u32 %s3, 4
      %s40 = int_to_ptr.vmem [resolvable:$true] %s39
      %42 = dma.vmem_to_smem %s40, 128, [#allocation7], [#allocation6]
    $region17: #{my_neural_network_forward.1} parent=1 // pred_fallthru
      _
    // Predicated region
    $region18: #{my_neural_network_forward.1} parent=1 // pred_check
      _
    $region19: #{my_neural_network_forward.1} parent=1 // pred_check_branch
      %44 = sbr.rel (0) target = $region21
    $region20: #{my_neural_network_forward.1} parent=1 // pred_region
      %46 = vsyncadd [#allocation9], 0
      %s48 = sshll.u32 %s4, 4
      %s49 = int_to_ptr.vmem [resolvable:$true] %s48
      %51 = dma.vmem_to_smem %s49, 16, [#allocation8], [#allocation9]
    $region21: #{my_neural_network_forward.1} parent=1 // pred_fallthru
      _
    // Predicated region
    $region22: #{my_neural_network_forward.1} parent=1 // pred_check
      _
    $region23: #{my_neural_network_forward.1} parent=1 // pred_check_branch
      %53 = sbr.rel (0) target = $region25
    $region24: #{my_neural_network_forward.1} parent=1 // pred_region
      %55 = dma.done [#allocation4], 128
    $region25: #{my_neural_network_forward.1} parent=1 // pred_fallthru
      _
    // Predicated region
    $region26: #{my_neural_network_forward.1} parent=1 // pred_check
      _
    $region27: #{my_neural_network_forward.1} parent=1 // pred_check_branch
      %57 = sbr.rel (0) target = $region29
    $region28: #{my_neural_network_forward.1} parent=1 // pred_region
      %59 = dma.done [#allocation6], 16
    $region29: #{my_neural_network_forward.1} parent=1 // pred_fallthru
      _
    // Predicated region
    $region30: #{my_neural_network_forward.1} parent=1 // pred_check
      _
    $region31: #{my_neural_network_forward.1} parent=1 // pred_check_branch
      %61 = sbr.rel (0) target = $region33
    $region32: #{my_neural_network_forward.1} parent=1 // pred_region
      %63 = dma.done [#allocation6], 128
    $region33: #{my_neural_network_forward.1} parent=1 // pred_fallthru
      _
    // Predicated region
    $region34: #{my_neural_network_forward.1} parent=1 // pred_check
      _
    $region35: #{my_neural_network_forward.1} parent=1 // pred_check_branch
      %65 = sbr.rel (0) target = $region37
    $region36: #{my_neural_network_forward.1} parent=1 // pred_region
      %67 = dma.done [#allocation9], 16
    $region37: #{my_neural_network_forward.1} parent=1 // pred_fallthru
      _
    %68 = sfence
    %v69 = vld [vmem:[%s0] sm:$0x1f]
    %s70 = sld [smem:[#allocation2]]
    %v71 = vstv %s70
    %v72 = vmul.f32 %v69, %v71
    %s73 = sld [smem:[#allocation2 + $0x80]]
    %v74 = vstv %s73
    %v75 = vmul.f32 %v69, %v74
    %v77 = vrot.slane %v75, 1
    %v79 = vadd.f32 %v72, %v77
    %s80 = sld [smem:[#allocation2 + $0x100]]
    %v81 = vstv %s80
    %v82 = vmul.f32 %v69, %v81
    %v84 = vrot.slane %v82, 2
    %v86 = vadd.f32 %v79, %v84
    %s87 = sld [smem:[#allocation2 + $0x180]]
    %v88 = vstv %s87
    %v89 = vmul.f32 %v69, %v88
    %v91 = vrot.slane %v89, 3
    %v93 = vadd.f32 %v86, %v91
    %s94 = sld [smem:[#allocation2 + $0x200]]
    %v95 = vstv %s94
    %v96 = vmul.f32 %v69, %v95
    %v98 = vrot.slane %v96, 4
    %v100 = vadd.f32 %v93, %v98
    %s101 = sld [smem:[#allocation5]]
    %v102 = vstv %s101
    %v103 = vadd.f32 %v100, %v102
    %v104 = vmax.f32 %v103, 0.0
    %s105 = sld [smem:[#allocation2 + $0x1]]
    %v106 = vstv %s105
    %v107 = vmul.f32 %v69, %v106
    %s108 = sld [smem:[#allocation2 + $0x81]]
    %v109 = vstv %s108
    %v110 = vmul.f32 %v69, %v109
    %v112 = vrot.slane %v110, 1
    %v114 = vadd.f32 %v107, %v112
    %s115 = sld [smem:[#allocation2 + $0x101]]
    %v116 = vstv %s115
    %v117 = vmul.f32 %v69, %v116
    %v119 = vrot.slane %v117, 2
    %v121 = vadd.f32 %v114, %v119
    %s122 = sld [smem:[#allocation2 + $0x181]]
    %v123 = vstv %s122
    %v124 = vmul.f32 %v69, %v123
    %v126 = vrot.slane %v124, 3
    %v128 = vadd.f32 %v121, %v126
    %s129 = sld [smem:[#allocation2 + $0x201]]
    %v130 = vstv %s129
    %v131 = vmul.f32 %v69, %v130
    %v133 = vrot.slane %v131, 4
    %v135 = vadd.f32 %v128, %v133
    %s136 = sld [smem:[#allocation5 + $0x1]]
    %v137 = vstv %s136
    %v138 = vadd.f32 %v135, %v137
    %v139 = vmax.f32 %v138, 0.0
    %s140 = sld [smem:[#allocation2 + $0x2]]
    %v141 = vstv %s140
    %v142 = vmul.f32 %v69, %v141
    %s143 = sld [smem:[#allocation2 + $0x82]]
    %v144 = vstv %s143
    %v145 = vmul.f32 %v69, %v144
    %v147 = vrot.slane %v145, 1
    %v149 = vadd.f32 %v142, %v147
    %s150 = sld [smem:[#allocation2 + $0x102]]
    %v151 = vstv %s150
    %v152 = vmul.f32 %v69, %v151
    %v154 = vrot.slane %v152, 2
    %v156 = vadd.f32 %v149, %v154
    %s157 = sld [smem:[#allocation2 + $0x182]]
    %v158 = vstv %s157
    %v159 = vmul.f32 %v69, %v158
    %v161 = vrot.slane %v159, 3
    %v163 = vadd.f32 %v156, %v161
    %s164 = sld [smem:[#allocation2 + $0x202]]
    %v165 = vstv %s164
    %v166 = vmul.f32 %v69, %v165
    %v168 = vrot.slane %v166, 4
    %v170 = vadd.f32 %v163, %v168
    %s171 = sld [smem:[#allocation5 + $0x2]]
    %v172 = vstv %s171
    %v173 = vadd.f32 %v170, %v172
    %v174 = vmax.f32 %v173, 0.0
    %s175 = sld [smem:[#allocation2 + $0x3]]
    %v176 = vstv %s175
    %v177 = vmul.f32 %v69, %v176
    %s178 = sld [smem:[#allocation2 + $0x83]]
    %v179 = vstv %s178
    %v180 = vmul.f32 %v69, %v179
    %v182 = vrot.slane %v180, 1
    %v184 = vadd.f32 %v177, %v182
    %s185 = sld [smem:[#allocation2 + $0x103]]
    %v186 = vstv %s185
    %v187 = vmul.f32 %v69, %v186
    %v189 = vrot.slane %v187, 2
    %v191 = vadd.f32 %v184, %v189
    %s192 = sld [smem:[#allocation2 + $0x183]]
    %v193 = vstv %s192
    %v194 = vmul.f32 %v69, %v193
    %v196 = vrot.slane %v194, 3
    %v198 = vadd.f32 %v191, %v196
    %s199 = sld [smem:[#allocation2 + $0x203]]
    %v200 = vstv %s199
    %v201 = vmul.f32 %v69, %v200
    %v203 = vrot.slane %v201, 4
    %v205 = vadd.f32 %v198, %v203
    %s206 = sld [smem:[#allocation5 + $0x3]]
    %v207 = vstv %s206
    %v208 = vadd.f32 %v205, %v207
    %v209 = vmax.f32 %v208, 0.0
    %s210 = sld [smem:[#allocation2 + $0x4]]
    %v211 = vstv %s210
    %v212 = vmul.f32 %v69, %v211
    %s213 = sld [smem:[#allocation2 + $0x84]]
    %v214 = vstv %s213
    %v215 = vmul.f32 %v69, %v214
    %v217 = vrot.slane %v215, 1
    %v219 = vadd.f32 %v212, %v217
    %s220 = sld [smem:[#allocation2 + $0x104]]
    %v221 = vstv %s220
    %v222 = vmul.f32 %v69, %v221
    %v224 = vrot.slane %v222, 2
    %v226 = vadd.f32 %v219, %v224
    %s227 = sld [smem:[#allocation2 + $0x184]]
    %v228 = vstv %s227
    %v229 = vmul.f32 %v69, %v228
    %v231 = vrot.slane %v229, 3
    %v233 = vadd.f32 %v226, %v231
    %s234 = sld [smem:[#allocation2 + $0x204]]
    %v235 = vstv %s234
    %v236 = vmul.f32 %v69, %v235
    %v238 = vrot.slane %v236, 4
    %v240 = vadd.f32 %v233, %v238
    %s241 = sld [smem:[#allocation5 + $0x4]]
    %v242 = vstv %s241
    %v243 = vadd.f32 %v240, %v242
    %v244 = vmax.f32 %v243, 0.0
    %s245 = sld [smem:[#allocation7]]
    %v246 = vstv %s245
    %v247 = vmul.f32 %v104, %v246
    %s248 = sld [smem:[#allocation7 + $0x80]]
    %v249 = vstv %s248
    %v250 = vmul.f32 %v139, %v249
    %v251 = vadd.f32 %v247, %v250
    %s252 = sld [smem:[#allocation7 + $0x100]]
    %v253 = vstv %s252
    %v254 = vmul.f32 %v174, %v253
    %v255 = vadd.f32 %v251, %v254
    %s256 = sld [smem:[#allocation7 + $0x180]]
    %v257 = vstv %s256
    %v258 = vmul.f32 %v209, %v257
    %v259 = vadd.f32 %v255, %v258
    %s260 = sld [smem:[#allocation7 + $0x200]]
    %v261 = vstv %s260
    %v262 = vmul.f32 %v244, %v261
    %v263 = vadd.f32 %v259, %v262
    %s264 = sld [smem:[#allocation8]]
    %v265 = vstv %s264
    %v266 = vadd.f32 %v263, %v265
    %s267 = sld [smem:[#allocation7 + $0x1]]
    %v268 = vstv %s267
    %v269 = vmul.f32 %v104, %v268
    %s270 = sld [smem:[#allocation7 + $0x81]]
    %v271 = vstv %s270
    %v272 = vmul.f32 %v139, %v271
    %v273 = vadd.f32 %v269, %v272
    %s274 = sld [smem:[#allocation7 + $0x101]]
    %v275 = vstv %s274
    %v276 = vmul.f32 %v174, %v275
    %v277 = vadd.f32 %v273, %v276
    %s278 = sld [smem:[#allocation7 + $0x181]]
    %v279 = vstv %s278
    %v280 = vmul.f32 %v209, %v279
    %v281 = vadd.f32 %v277, %v280
    %s282 = sld [smem:[#allocation7 + $0x201]]
    %v283 = vstv %s282
    %v284 = vmul.f32 %v244, %v283
    %v285 = vadd.f32 %v281, %v284
    %s286 = sld [smem:[#allocation8 + $0x1]]
    %v287 = vstv %s286
    %v288 = vadd.f32 %v285, %v287
    %s289 = sld [smem:[#allocation7 + $0x2]]
    %v290 = vstv %s289
    %v291 = vmul.f32 %v104, %v290
    %s292 = sld [smem:[#allocation7 + $0x82]]
    %v293 = vstv %s292
    %v294 = vmul.f32 %v139, %v293
    %v295 = vadd.f32 %v291, %v294
    %s296 = sld [smem:[#allocation7 + $0x102]]
    %v297 = vstv %s296
    %v298 = vmul.f32 %v174, %v297
    %v299 = vadd.f32 %v295, %v298
    %s300 = sld [smem:[#allocation7 + $0x182]]
    %v301 = vstv %s300
    %v302 = vmul.f32 %v209, %v301
    %v303 = vadd.f32 %v299, %v302
    %s304 = sld [smem:[#allocation7 + $0x202]]
    %v305 = vstv %s304
    %v306 = vmul.f32 %v244, %v305
    %v307 = vadd.f32 %v303, %v306
    %s308 = sld [smem:[#allocation8 + $0x2]]
    %v309 = vstv %s308
    %v310 = vadd.f32 %v307, %v309
    %s311 = sld [smem:[#allocation7 + $0x3]]
    %v312 = vstv %s311
    %v313 = vmul.f32 %v104, %v312
    %s314 = sld [smem:[#allocation7 + $0x83]]
    %v315 = vstv %s314
    %v316 = vmul.f32 %v139, %v315
    %v317 = vadd.f32 %v313, %v316
    %s318 = sld [smem:[#allocation7 + $0x103]]
    %v319 = vstv %s318
    %v320 = vmul.f32 %v174, %v319
    %v321 = vadd.f32 %v317, %v320
    %s322 = sld [smem:[#allocation7 + $0x183]]
    %v323 = vstv %s322
    %v324 = vmul.f32 %v209, %v323
    %v325 = vadd.f32 %v321, %v324
    %s326 = sld [smem:[#allocation7 + $0x203]]
    %v327 = vstv %s326
    %v328 = vmul.f32 %v244, %v327
    %v329 = vadd.f32 %v325, %v328
    %s330 = sld [smem:[#allocation8 + $0x3]]
    %v331 = vstv %s330
    %v332 = vadd.f32 %v329, %v331
    %v334 = vrot.slane %v288, 7
    %v337 = vrot.slane %v310, 6
    %v340 = vrot.slane %v332, 5
    %vm342 = vcmask 1040384
    %v343 = vsel %vm342, %v266, %v334
    %vm344 = vcmask 1041408
    %v345 = vsel %vm344, %v343, %v337
    %vm346 = vcmask 1042432
    %v347 = vsel %vm346, %v345, %v340
    %348 = vst [vmem:[#allocation10] sm:$0xf] %v347
    // Predicated region
    $region38: #{my_neural_network_forward.1} parent=1 // pred_check
      _
    $region39: #{my_neural_network_forward.1} parent=1 // pred_check_branch
      %350 = sbr.rel (0) target = $region41
    $region40: #{my_neural_network_forward.1} parent=1 // pred_region
      %352 = vsyncadd [#allocation3], 0
      %s354 = sshll.u32 [#allocation10], 4
      %s355 = int_to_ptr.vmem [resolvable:$true] %s354
      %s356 = sshll.u32 %s5, 4
      %s357 = int_to_ptr.hbm [resolvable:$true] %s356
      %359 = dma.vmem_to_hbm [thread:$0]  %s355, 64, %s357, [#allocation3]
    $region41: #{my_neural_network_forward.1} parent=1 // pred_fallthru
      _
    // Predicated region
    $region42: #{my_neural_network_forward.1} parent=1 // pred_check
      _
    $region43: #{my_neural_network_forward.1} parent=1 // pred_check_branch
      %361 = sbr.rel (0) target = $region45
    $region44: #{my_neural_network_forward.1} parent=1 // pred_region
      %363 = dma.done [#allocation3], 64
    $region45: #{my_neural_network_forward.1} parent=1 // pred_fallthru
      _
    %364 = vsyncpa [#allocation3], 1
    %365 = vsyncpa [#allocation4], 1
    %366 = vsyncpa [#allocation6], 1
    %367 = vsyncpa [#allocation9], 1

</llo_original>
